<compile_context>
chip_gen: v7x
topology: tpu7x:2x2x1
jax: 0.10.0
libtpu: 0.0.40
codegen_flags: <defaults>
</compile_context>

<pallas_src>
import jax
import jax.numpy as jnp
from jax.experimental import pallas as pl
from jax.experimental.pallas import tpu as pltpu

LOG_STD_MIN, LOG_STD_MAX = -20.0, 2.0
LANE = 128  # f32 lane width


def soft_actor_kernel(x_ref, w1_ref, b1_ref, w2_ref, b2_ref, w3_ref, b3_ref,
                      out_ref):
    x = x_ref[...]                                     # (3, TB)  lane-dense
    w1 = w1_ref[...]                                   # (H, 3)

    # Layer 1: K=3 contraction as three VPU broadcast-MACs -> (H, TB).
    h1 = jnp.tanh(w1[:, 0:1] * x[0:1, :]
                  + w1[:, 1:2] * x[1:2, :]
                  + w1[:, 2:3] * x[2:3, :]
                  + b1_ref[...])                       # (H, TB)

    # Layer 2: (H, H) @ (H, TB) on the MXU.
    h2 = jnp.tanh(
        jnp.dot(w2_ref[...], h1, preferred_element_type=jnp.float32)
        + b2_ref[...])                                 # (H, TB)

    # Layer 3: (2, H) @ (H, TB) -> row 0 = mean, row 1 = log_std.
    h3 = (jnp.dot(w3_ref[...], h2, preferred_element_type=jnp.float32)
          + b3_ref[...])                               # (2, TB)

    # Two dense row stores; exp/clip only on the log_std row.
    out_ref[0:1, :] = h3[0:1, :]
    out_ref[1:2, :] = jnp.exp(jnp.clip(h3[1:2, :], LOG_STD_MIN, LOG_STD_MAX))


def soft_actor_forward(state, params, *, block_b=16384):
    """Fused SoftActor MLP. Returns (policy_mean, policy_std), each (B, 1)."""
    w1, b1, w2, b2, w3, b3 = params
    B = state.shape[0]
    H = w1.shape[1]

    # Batch tile on the lane axis: multiple of 128, capped by block_b and by
    # ceil(B/2) (rounded up to a lane tile) so the grid has >=2 steps whenever
    # B is large enough -> megacore sharding on v7x.
    tb_cap = max(LANE, (block_b // LANE) * LANE)
    half_b = pl.cdiv((B + 1) // 2, LANE) * LANE
    TB = max(LANE, min(tb_cap, half_b))
    Bp = pl.cdiv(B, TB) * TB
    grid = (Bp // TB,)

    # Lane-dense layout: batch is the last (lane) dim of every streamed array.
    x_t = state.T                                      # (3, B)
    if Bp != B:
        x_t = jnp.pad(x_t, ((0, 0), (0, Bp - B)))      # (3, Bp)

    w1_t, w2_t, w3_t = w1.T, w2.T, w3.T                # (H,3), (H,H), (2,H)
    b1_c = b1.reshape(H, 1)
    b2_c = b2.reshape(H, 1)
    b3_c = b3.reshape(2, 1)

    def const_spec(arr):
        # Full-array block, constant index_map -> DMA'd once, VMEM-resident.
        return pl.BlockSpec(arr.shape, lambda i: (0, 0))

    out = pl.pallas_call(
        soft_actor_kernel,
        out_shape=jax.ShapeDtypeStruct((2, Bp), jnp.float32),
        grid=grid,
        in_specs=[
            pl.BlockSpec((3, TB), lambda i: (0, i)),   # state^T, tiled on lanes
            const_spec(w1_t), const_spec(b1_c),
            const_spec(w2_t), const_spec(b2_c),
            const_spec(w3_t), const_spec(b3_c),
        ],
        out_specs=pl.BlockSpec((2, TB), lambda i: (0, i)),
        compiler_params=pltpu.CompilerParams(
            dimension_semantics=("parallel",),
            vmem_limit_bytes=64 * 1024 * 1024),
    )(x_t, w1_t, b1_c, w2_t, b2_c, w3_t, b3_c)

    mean = out[0, :B][:, None]
    std = out[1, :B][:, None]
    return mean, std


def init_params(hidden_size, key):
    """Deterministic init mimicking PyTorch Linear default (U[-1/sqrt(fan_in), ...])."""
    ks = jax.random.split(key, 6)

    def linear(kw, kb, fan_in, fan_out):
        bound = 1.0 / jnp.sqrt(jnp.float32(fan_in))
        w = jax.random.uniform(kw, (fan_in, fan_out), jnp.float32, -bound, bound)
        b = jax.random.uniform(kb, (1, fan_out), jnp.float32, -bound, bound)
        return w, b

    w1, b1 = linear(ks[0], ks[1], 3, hidden_size)
    w2, b2 = linear(ks[2], ks[3], hidden_size, hidden_size)
    w3, b3 = linear(ks[4], ks[5], hidden_size, 2)
    return (w1, b1, w2, b2, w3, b3)


def reference_forward(state, params):
    w1, b1, w2, b2, w3, b3 = params
    hp = jax.lax.Precision.HIGHEST
    h1 = jnp.tanh(jnp.dot(state, w1, precision=hp) + b1)
    h2 = jnp.tanh(jnp.dot(h1, w2, precision=hp) + b2)
    h3 = jnp.dot(h2, w3, precision=hp) + b3
    mean = h3[:, 0:1]
    log_std = jnp.clip(h3[:, 1:2], LOG_STD_MIN, LOG_STD_MAX)
    return mean, jnp.exp(log_std)


if __name__ == "__main__":
    key = jax.random.PRNGKey(0)
    k_params, k_state1, k_state2 = jax.random.split(key, 3)

    hidden_size = 32
    params = init_params(hidden_size, k_params)

    # Small single-tile case (B=8 -> one 128-wide lane tile, tail padded).
    state_small = jax.random.normal(k_state1, (8, 3), jnp.float32)
    mean, std = soft_actor_forward(state_small, params)
    jax.block_until_ready((mean, std))
    ref_mean, ref_std = reference_forward(state_small, params)
    assert mean.shape == (8, 1) and std.shape == (8, 1)
    assert jnp.allclose(mean, ref_mean, atol=2e-3, rtol=2e-3)
    assert jnp.allclose(std, ref_std, atol=2e-3, rtol=2e-3)

    # Multi-step grid + padding path (TB=128 -> 3 grid steps over B=300).
    state_big = jax.random.normal(k_state2, (300, 3), jnp.float32)
    mean_b, std_b = soft_actor_forward(state_big, params, block_b=128)
    jax.block_until_ready((mean_b, std_b))
    ref_mean_b, ref_std_b = reference_forward(state_big, params)
    assert mean_b.shape == (300, 1) and std_b.shape == (300, 1)
    assert jnp.allclose(mean_b, ref_mean_b, atol=2e-3, rtol=2e-3)
    assert jnp.allclose(std_b, ref_std_b, atol=2e-3, rtol=2e-3)

    print("KERNEL_OK")
</pallas_src>

<mosaic_0001>
module attributes {stable_mosaic.version = 11 : i64} {
  func.func @soft_actor_kernel(%arg0: i32, %arg1: memref<3x128xf32, #tpu.memory_space<vmem>>, %arg2: memref<32x3xf32, #tpu.memory_space<vmem>>, %arg3: memref<32x1xf32, #tpu.memory_space<vmem>>, %arg4: memref<32x32xf32, #tpu.memory_space<vmem>>, %arg5: memref<32x1xf32, #tpu.memory_space<vmem>>, %arg6: memref<2x32xf32, #tpu.memory_space<vmem>>, %arg7: memref<2x1xf32, #tpu.memory_space<vmem>>, %arg8: memref<2x128xf32, #tpu.memory_space<vmem>>) attributes {dimension_semantics = [#tpu.dimension_semantics<parallel>], iteration_bounds = array<i64: 1>, scalar_prefetch = 0 : i64, scratch_operands = 0 : i64, tpu.core_type = #tpu.core_type<tc>, window_params = [{transform_indices = @transform_0, window_bounds = array<i64: 3, 128>}, {pipeline_mode = #tpu.pipeline_mode<synchronous>, transform_indices = @transform_1, window_bounds = array<i64: 32, 3>}, {pipeline_mode = #tpu.pipeline_mode<synchronous>, transform_indices = @transform_2, window_bounds = array<i64: 32, 1>}, {pipeline_mode = #tpu.pipeline_mode<synchronous>, transform_indices = @transform_3, window_bounds = array<i64: 32, 32>}, {pipeline_mode = #tpu.pipeline_mode<synchronous>, transform_indices = @transform_4, window_bounds = array<i64: 32, 1>}, {pipeline_mode = #tpu.pipeline_mode<synchronous>, transform_indices = @transform_5, window_bounds = array<i64: 2, 32>}, {pipeline_mode = #tpu.pipeline_mode<synchronous>, transform_indices = @transform_6, window_bounds = array<i64: 2, 1>}, {transform_indices = @transform_7, window_bounds = array<i64: 2, 128>}]} {
    %c0 = arith.constant 0 : index
    %c0_0 = arith.constant 0 : index
    %0 = vector.load %arg1[%c0, %c0_0] : memref<3x128xf32, #tpu.memory_space<vmem>>, vector<3x128xf32>
    %c0_1 = arith.constant 0 : index
    %c0_2 = arith.constant 0 : index
    %1 = vector.load %arg2[%c0_1, %c0_2] : memref<32x3xf32, #tpu.memory_space<vmem>>, vector<32x3xf32>
    %2 = vector.extract_strided_slice %1 {offsets = [0, 0], sizes = [32, 1], strides = [1, 1]} : vector<32x3xf32> to vector<32x1xf32>
    %3 = vector.extract_strided_slice %0 {offsets = [0, 0], sizes = [1, 128], strides = [1, 1]} : vector<3x128xf32> to vector<1x128xf32>
    %4 = vector.broadcast %2 : vector<32x1xf32> to vector<32x128xf32>
    %5 = vector.broadcast %3 : vector<1x128xf32> to vector<32x128xf32>
    %6 = arith.mulf %4, %5 : vector<32x128xf32>
    %7 = vector.extract_strided_slice %1 {offsets = [0, 1], sizes = [32, 1], strides = [1, 1]} : vector<32x3xf32> to vector<32x1xf32>
    %8 = vector.extract_strided_slice %0 {offsets = [1, 0], sizes = [1, 128], strides = [1, 1]} : vector<3x128xf32> to vector<1x128xf32>
    %9 = vector.broadcast %7 : vector<32x1xf32> to vector<32x128xf32>
    %10 = vector.broadcast %8 : vector<1x128xf32> to vector<32x128xf32>
    %11 = arith.mulf %9, %10 : vector<32x128xf32>
    %12 = arith.addf %6, %11 : vector<32x128xf32>
    %13 = vector.extract_strided_slice %1 {offsets = [0, 2], sizes = [32, 1], strides = [1, 1]} : vector<32x3xf32> to vector<32x1xf32>
    %14 = vector.extract_strided_slice %0 {offsets = [2, 0], sizes = [1, 128], strides = [1, 1]} : vector<3x128xf32> to vector<1x128xf32>
    %15 = vector.broadcast %13 : vector<32x1xf32> to vector<32x128xf32>
    %16 = vector.broadcast %14 : vector<1x128xf32> to vector<32x128xf32>
    %17 = arith.mulf %15, %16 : vector<32x128xf32>
    %18 = arith.addf %12, %17 : vector<32x128xf32>
    %c0_3 = arith.constant 0 : index
    %c0_4 = arith.constant 0 : index
    %19 = vector.load %arg3[%c0_3, %c0_4] : memref<32x1xf32, #tpu.memory_space<vmem>>, vector<32x1xf32>
    %20 = vector.broadcast %19 : vector<32x1xf32> to vector<32x128xf32>
    %21 = arith.addf %18, %20 : vector<32x128xf32>
    %22 = math.tanh %21 : vector<32x128xf32>
    %c0_5 = arith.constant 0 : index
    %c0_6 = arith.constant 0 : index
    %23 = vector.load %arg4[%c0_5, %c0_6] : memref<32x32xf32, #tpu.memory_space<vmem>>, vector<32x32xf32>
    %cst = arith.constant dense<0.000000e+00> : vector<32x128xf32>
    %24 = tpu.matmul %23, %22, %cst {dimension_numbers = #tpu.dot_dimension_numbers<[1], [0], [0], [1], [0, 0, 1, 1], [], []>} : vector<32x32xf32>, vector<32x128xf32>, vector<32x128xf32> -> vector<32x128xf32>
    %c0_7 = arith.constant 0 : index
    %c0_8 = arith.constant 0 : index
    %25 = vector.load %arg5[%c0_7, %c0_8] : memref<32x1xf32, #tpu.memory_space<vmem>>, vector<32x1xf32>
    %26 = vector.broadcast %25 : vector<32x1xf32> to vector<32x128xf32>
    %27 = arith.addf %24, %26 : vector<32x128xf32>
    %28 = math.tanh %27 : vector<32x128xf32>
    %c0_9 = arith.constant 0 : index
    %c0_10 = arith.constant 0 : index
    %29 = vector.load %arg6[%c0_9, %c0_10] : memref<2x32xf32, #tpu.memory_space<vmem>>, vector<2x32xf32>
    %cst_11 = arith.constant dense<0.000000e+00> : vector<2x128xf32>
    %30 = tpu.matmul %29, %28, %cst_11 {dimension_numbers = #tpu.dot_dimension_numbers<[1], [0], [0], [1], [0, 0, 1, 1], [], []>} : vector<2x32xf32>, vector<32x128xf32>, vector<2x128xf32> -> vector<2x128xf32>
    %c0_12 = arith.constant 0 : index
    %c0_13 = arith.constant 0 : index
    %31 = vector.load %arg7[%c0_12, %c0_13] : memref<2x1xf32, #tpu.memory_space<vmem>>, vector<2x1xf32>
    %32 = vector.broadcast %31 : vector<2x1xf32> to vector<2x128xf32>
    %33 = arith.addf %30, %32 : vector<2x128xf32>
    %34 = vector.extract_strided_slice %33 {offsets = [0, 0], sizes = [1, 128], strides = [1, 1]} : vector<2x128xf32> to vector<1x128xf32>
    %c0_14 = arith.constant 0 : index
    %c0_15 = arith.constant 0 : index
    %35 = vector.load %arg8[%c0_14, %c0_15] : memref<2x128xf32, #tpu.memory_space<vmem>>, vector<1x128xf32>
    tpu.vector_store %arg8[%c0_14, %c0_15], %34 {strides = array<i32>} : memref<2x128xf32, #tpu.memory_space<vmem>>, vector<1x128xf32>,
    %36 = vector.extract_strided_slice %33 {offsets = [1, 0], sizes = [1, 128], strides = [1, 1]} : vector<2x128xf32> to vector<1x128xf32>
    %cst_16 = arith.constant -2.000000e+01 : f32
    %cst_17 = arith.constant 2.000000e+00 : f32
    %37 = vector.broadcast %cst_16 : f32 to vector<1x128xf32>
    %38 = arith.maximumf %37, %36 : vector<1x128xf32>
    %39 = vector.broadcast %cst_17 : f32 to vector<1x128xf32>
    %40 = arith.minimumf %39, %38 : vector<1x128xf32>
    %41 = math.exp %40 : vector<1x128xf32>
    %c1 = arith.constant 1 : index
    %c0_18 = arith.constant 0 : index
    %42 = vector.load %arg8[%c1, %c0_18] : memref<2x128xf32, #tpu.memory_space<vmem>>, vector<1x128xf32>
    tpu.vector_store %arg8[%c1, %c0_18], %41 {strides = array<i32>} : memref<2x128xf32, #tpu.memory_space<vmem>>, vector<1x128xf32>,
    return
  }
  func.func @transform_0(%arg0: i32) -> (i32, i32) {
    %c0_i32 = arith.constant 0 : i32
    %c0_i32_0 = arith.constant 0 : i32
    return %c0_i32, %arg0 : i32, i32
  }
  func.func @transform_1(%arg0: i32) -> (i32, i32) {
    %c0_i32 = arith.constant 0 : i32
    %c0_i32_0 = arith.constant 0 : i32
    %c0_i32_1 = arith.constant 0 : i32
    return %c0_i32, %c0_i32_0 : i32, i32
  }
  func.func @transform_2(%arg0: i32) -> (i32, i32) {
    %c0_i32 = arith.constant 0 : i32
    %c0_i32_0 = arith.constant 0 : i32
    %c0_i32_1 = arith.constant 0 : i32
    return %c0_i32, %c0_i32_0 : i32, i32
  }
  func.func @transform_3(%arg0: i32) -> (i32, i32) {
    %c0_i32 = arith.constant 0 : i32
    %c0_i32_0 = arith.constant 0 : i32
    %c0_i32_1 = arith.constant 0 : i32
    return %c0_i32, %c0_i32_0 : i32, i32
  }
  func.func @transform_4(%arg0: i32) -> (i32, i32) {
    %c0_i32 = arith.constant 0 : i32
    %c0_i32_0 = arith.constant 0 : i32
    %c0_i32_1 = arith.constant 0 : i32
    return %c0_i32, %c0_i32_0 : i32, i32
  }
  func.func @transform_5(%arg0: i32) -> (i32, i32) {
    %c0_i32 = arith.constant 0 : i32
    %c0_i32_0 = arith.constant 0 : i32
    %c0_i32_1 = arith.constant 0 : i32
    return %c0_i32, %c0_i32_0 : i32, i32
  }
  func.func @transform_6(%arg0: i32) -> (i32, i32) {
    %c0_i32 = arith.constant 0 : i32
    %c0_i32_0 = arith.constant 0 : i32
    %c0_i32_1 = arith.constant 0 : i32
    return %c0_i32, %c0_i32_0 : i32, i32
  }
  func.func @transform_7(%arg0: i32) -> (i32, i32) {
    %c0_i32 = arith.constant 0 : i32
    %c0_i32_0 = arith.constant 0 : i32
    return %c0_i32, %arg0 : i32, i32
  }
}

</mosaic_0001>

<llo_original>
// kernel: tpu_custom_call.1
$region0: #{tpu_custom_call.1}
  #allocation0 [shape = 'u32[]', space=smem, size = 0x4, offset = 0x4, fixed_abs, tag = 'smem constant byte address 0x4 - core index']
  #allocation1 [shape = 'u32[144,128]{1,0:T(1,128)}', space=vmem, size = 0x12000, scoped, tag = 'internal scratch']
  %s0 = inlined_call_operand.hbm [shape: f32[3,128], index: 0, kind: input, shape index: {}]
  %s1 = inlined_call_operand.hbm [shape: f32[32,3], index: 1, kind: input, shape index: {}]
  %s2 = inlined_call_operand.hbm [shape: f32[32,1], index: 2, kind: input, shape index: {}]
  %s3 = inlined_call_operand.hbm [shape: f32[32,32], index: 3, kind: input, shape index: {}]
  %s4 = inlined_call_operand.hbm [shape: f32[32,1], index: 4, kind: input, shape index: {}]
  %s5 = inlined_call_operand.hbm [shape: f32[2,32], index: 5, kind: input, shape index: {}]
  %s6 = inlined_call_operand.hbm [shape: f32[2,1], index: 6, kind: input, shape index: {}]
  %s7 = inlined_call_operand.hbm [shape: f32[2,128], index: 7, kind: output, shape index: {}]
  %s8 = sld [smem:[#allocation0]]
  $region66: #{tpu_custom_call.1} parent=0
    _
  %s10 = ssub.s32 1, %s8
  %s11 = scalar_select 0, %s10, %s8
  $region1: #{tpu_custom_call.1} parent=0
    #allocation2 [shape = 'u8[2048]{0}', space=vmem, size = 0x800, scoped, tag = 'input window, operand 0, single buffered']
    #allocation3 [shape = 's32[1]{0}', space=sflag, size = 0x4, scoped, tag = 'scoped memory for tpu_custom_call.1']
    #allocation4 [shape = 's32[1]{0}', space=sflag, size = 0x4, scoped, tag = 'scoped memory for tpu_custom_call.1']
    #allocation5 [shape = 'u8[16384]{0}', space=vmem, size = 0x4000, scoped, tag = 'input window, operand 1, single buffered']
    #allocation6 [shape = 's32[1]{0}', space=sflag, size = 0x4, scoped, tag = 'scoped memory for tpu_custom_call.1']
    #allocation7 [shape = 'u8[16384]{0}', space=vmem, size = 0x4000, scoped, tag = 'input window, operand 2, single buffered']
    #allocation8 [shape = 'u8[16384]{0}', space=vmem, size = 0x4000, scoped, tag = 'input window, operand 3, single buffered']
    #allocation9 [shape = 's32[1]{0}', space=sflag, size = 0x4, scoped, tag = 'scoped memory for tpu_custom_call.1']
    #allocation10 [shape = 'u8[16384]{0}', space=vmem, size = 0x4000, scoped, tag = 'input window, operand 4, single buffered']
    #allocation11 [shape = 'u8[1024]{0}', space=vmem, size = 0x400, scoped, tag = 'input window, operand 5, single buffered']
    #allocation12 [shape = 's32[1]{0}', space=sflag, size = 0x4, scoped, tag = 'scoped memory for tpu_custom_call.1']
    #allocation13 [shape = 'u8[1024]{0}', space=vmem, size = 0x400, scoped, tag = 'input window, operand 6, single buffered']
    #allocation14 [shape = 'u8[1024]{0}', space=vmem, size = 0x400, scoped, tag = 'output window, operand 0, single buffered']
    %12 = vsyncpa [#allocation3], 0
    %13 = vsyncpa [#allocation6], 0
    %14 = vsyncpa [#allocation9], 0
    %15 = vsyncpa [#allocation12], 0
    %16 = vsyncpa [#allocation4], 0
    // Predicated region
    $region2: #{tpu_custom_call.1} parent=1 // pred_check
      _
    $region3: #{tpu_custom_call.1} parent=1 // pred_check_branch
      %18 = sbr.rel (0) target = $region5
    $region4: #{tpu_custom_call.1} parent=1 // pred_region
      %s20 = ssub.s32 64, 64
      %21 = vsyncadd [#allocation3], %s20
      %s23 = sshll.u32 [#allocation2], 4
      %s24 = int_to_ptr.vmem [resolvable:$true] %s23
      %26 = dma.hbm_to_vmem [thread:$0]  %s0, 64, %s24, [#allocation3]
    $region5: #{tpu_custom_call.1} parent=1 // pred_fallthru
      _
    // Predicated region
    $region6: #{tpu_custom_call.1} parent=1 // pred_check
      _
    $region7: #{tpu_custom_call.1} parent=1 // pred_check_branch
      %28 = sbr.rel (0) target = $region9
    $region8: #{tpu_custom_call.1} parent=1 // pred_region
      %s30 = ssub.s32 512, 512
      %31 = vsyncadd [#allocation6], %s30
      %s32 = sshll.u32 [#allocation5], 4
      %s33 = int_to_ptr.vmem [resolvable:$true] %s32
      %38 = dma.hbm_to_vmem [thread:$0]  %s1, 512, %s33, [#allocation6], 128, 128, 8
    $region9: #{tpu_custom_call.1} parent=1 // pred_fallthru
      _
    // Predicated region
    $region10: #{tpu_custom_call.1} parent=1 // pred_check
      _
    $region11: #{tpu_custom_call.1} parent=1 // pred_check_branch
      %40 = sbr.rel (0) target = $region13
    $region12: #{tpu_custom_call.1} parent=1 // pred_region
      %s42 = ssub.s32 512, 512
      %43 = vsyncadd [#allocation6], %s42
      %s44 = sshll.u32 [#allocation7], 4
      %s45 = int_to_ptr.vmem [resolvable:$true] %s44
      %50 = dma.hbm_to_vmem [thread:$0]  %s2, 512, %s45, [#allocation6], 128, 128, 8
    $region13: #{tpu_custom_call.1} parent=1 // pred_fallthru
      _
    // Predicated region
    $region14: #{tpu_custom_call.1} parent=1 // pred_check
      _
    $region15: #{tpu_custom_call.1} parent=1 // pred_check_branch
      %52 = sbr.rel (0) target = $region17
    $region16: #{tpu_custom_call.1} parent=1 // pred_region
      %s54 = ssub.s32 512, 512
      %55 = vsyncadd [#allocation9], %s54
      %s56 = sshll.u32 [#allocation8], 4
      %s57 = int_to_ptr.vmem [resolvable:$true] %s56
      %62 = dma.hbm_to_vmem [thread:$0]  %s3, 512, %s57, [#allocation9], 128, 128, 8
    $region17: #{tpu_custom_call.1} parent=1 // pred_fallthru
      _
    // Predicated region
    $region18: #{tpu_custom_call.1} parent=1 // pred_check
      _
    $region19: #{tpu_custom_call.1} parent=1 // pred_check_branch
      %64 = sbr.rel (0) target = $region21
    $region20: #{tpu_custom_call.1} parent=1 // pred_region
      %s66 = ssub.s32 512, 512
      %67 = vsyncadd [#allocation9], %s66
      %s68 = sshll.u32 [#allocation10], 4
      %s69 = int_to_ptr.vmem [resolvable:$true] %s68
      %74 = dma.hbm_to_vmem [thread:$0]  %s4, 512, %s69, [#allocation9], 128, 128, 8
    $region21: #{tpu_custom_call.1} parent=1 // pred_fallthru
      _
    // Predicated region
    $region22: #{tpu_custom_call.1} parent=1 // pred_check
      _
    $region23: #{tpu_custom_call.1} parent=1 // pred_check_branch
      %76 = sbr.rel (0) target = $region25
    $region24: #{tpu_custom_call.1} parent=1 // pred_region
      %s78 = ssub.s32 32, 32
      %79 = vsyncadd [#allocation12], %s78
      %s81 = sshll.u32 [#allocation11], 4
      %s82 = int_to_ptr.vmem [resolvable:$true] %s81
      %84 = dma.hbm_to_vmem [thread:$0]  %s5, 32, %s82, [#allocation12]
    $region25: #{tpu_custom_call.1} parent=1 // pred_fallthru
      _
    // Predicated region
    $region26: #{tpu_custom_call.1} parent=1 // pred_check
      _
    $region27: #{tpu_custom_call.1} parent=1 // pred_check_branch
      %86 = sbr.rel (0) target = $region29
    $region28: #{tpu_custom_call.1} parent=1 // pred_region
      %s88 = ssub.s32 32, 32
      %89 = vsyncadd [#allocation12], %s88
      %s91 = sshll.u32 [#allocation13], 4
      %s92 = int_to_ptr.vmem [resolvable:$true] %s91
      %94 = dma.hbm_to_vmem [thread:$0]  %s6, 32, %s92, [#allocation12]
    $region29: #{tpu_custom_call.1} parent=1 // pred_fallthru
      _
    // Predicated region
    $region30: #{tpu_custom_call.1} parent=1 // pred_check
      _
    $region31: #{tpu_custom_call.1} parent=1 // pred_check_branch
      %96 = sbr.rel (0) target = $region33
    $region32: #{tpu_custom_call.1} parent=1 // pred_region
      %97 = dma.done [#allocation3], 64
    $region33: #{tpu_custom_call.1} parent=1 // pred_fallthru
      _
    // Predicated region
    $region34: #{tpu_custom_call.1} parent=1 // pred_check
      _
    $region35: #{tpu_custom_call.1} parent=1 // pred_check_branch
      %99 = sbr.rel (0) target = $region37
    $region36: #{tpu_custom_call.1} parent=1 // pred_region
      %100 = dma.done [#allocation6], 512
    $region37: #{tpu_custom_call.1} parent=1 // pred_fallthru
      _
    // Predicated region
    $region38: #{tpu_custom_call.1} parent=1 // pred_check
      _
    $region39: #{tpu_custom_call.1} parent=1 // pred_check_branch
      %102 = sbr.rel (0) target = $region41
    $region40: #{tpu_custom_call.1} parent=1 // pred_region
      %103 = dma.done [#allocation6], 512
    $region41: #{tpu_custom_call.1} parent=1 // pred_fallthru
      _
    // Predicated region
    $region42: #{tpu_custom_call.1} parent=1 // pred_check
      _
    $region43: #{tpu_custom_call.1} parent=1 // pred_check_branch
      %105 = sbr.rel (0) target = $region45
    $region44: #{tpu_custom_call.1} parent=1 // pred_region
      %106 = dma.done [#allocation9], 512
    $region45: #{tpu_custom_call.1} parent=1 // pred_fallthru
      _
    // Predicated region
    $region46: #{tpu_custom_call.1} parent=1 // pred_check
      _
    $region47: #{tpu_custom_call.1} parent=1 // pred_check_branch
      %108 = sbr.rel (0) target = $region49
    $region48: #{tpu_custom_call.1} parent=1 // pred_region
      %109 = dma.done [#allocation9], 512
    $region49: #{tpu_custom_call.1} parent=1 // pred_fallthru
      _
    // Predicated region
    $region50: #{tpu_custom_call.1} parent=1 // pred_check
      _
    $region51: #{tpu_custom_call.1} parent=1 // pred_check_branch
      %111 = sbr.rel (0) target = $region53
    $region52: #{tpu_custom_call.1} parent=1 // pred_region
      %112 = dma.done [#allocation12], 32
    $region53: #{tpu_custom_call.1} parent=1 // pred_fallthru
      _
    // Predicated region
    $region54: #{tpu_custom_call.1} parent=1 // pred_check
      _
    $region55: #{tpu_custom_call.1} parent=1 // pred_check_branch
      %114 = sbr.rel (0) target = $region57
    $region56: #{tpu_custom_call.1} parent=1 // pred_region
      %115 = dma.done [#allocation12], 32
    $region57: #{tpu_custom_call.1} parent=1 // pred_fallthru
      _
    %v116 = vld [vmem:[#allocation2] sm:$0x7]
    %v117 = vld [vmem:[#allocation5] sm:$0xff]
    %v118 = vld [vmem:[#allocation5 + $0x8] sm:$0xff]
    %v119 = vld [vmem:[#allocation5 + $0x10] sm:$0xff]
    %v120 = vld [vmem:[#allocation5 + $0x18] sm:$0xff]
    %122 = vset.pattern.permute.xlu0 0
    %123 = vperm.xlu0 %122, %v117
    %v124 = vpop.permute.xlu0 %123
    %127 = vset.pattern.permute.xlu0 0
    %128 = vperm.xlu0 %127, %v118
    %v129 = vpop.permute.xlu0 %128
    %132 = vset.pattern.permute.xlu0 0
    %133 = vperm.xlu0 %132, %v119
    %v134 = vpop.permute.xlu0 %133
    %137 = vset.pattern.permute.xlu0 0
    %138 = vperm.xlu0 %137, %v120
    %v139 = vpop.permute.xlu0 %138
    %v141 = vlaneseq
    %v142 = vshrl.u32 %v141, 7
    %v143 = vsub.s32 0, %v142
    %v144 = vrot.slane %v116, %v143
    %v145 = vmul.f32 %v124, %v144
    %v146 = vmul.f32 %v129, %v144
    %v147 = vmul.f32 %v134, %v144
    %v148 = vmul.f32 %v139, %v144
    %149 = vset.pattern.permute.xlu0 1
    %150 = vperm.xlu0 %149, %v117
    %v151 = vpop.permute.xlu0 %150
    %153 = vset.pattern.permute.xlu0 1
    %154 = vperm.xlu0 %153, %v118
    %v155 = vpop.permute.xlu0 %154
    %157 = vset.pattern.permute.xlu0 1
    %158 = vperm.xlu0 %157, %v119
    %v159 = vpop.permute.xlu0 %158
    %161 = vset.pattern.permute.xlu0 1
    %162 = vperm.xlu0 %161, %v120
    %v163 = vpop.permute.xlu0 %162
    %v165 = vlaneseq
    %v166 = vshrl.u32 %v165, 7
    %v167 = vsub.s32 1, %v166
    %v168 = vrot.slane %v116, %v167
    %v169 = vmul.f32 %v151, %v168
    %v170 = vmul.f32 %v155, %v168
    %v171 = vmul.f32 %v159, %v168
    %v172 = vmul.f32 %v163, %v168
    %v173 = vadd.f32 %v145, %v169
    %v174 = vadd.f32 %v146, %v170
    %v175 = vadd.f32 %v147, %v171
    %v176 = vadd.f32 %v148, %v172
    %177 = vset.pattern.permute.xlu0 2
    %178 = vperm.xlu0 %177, %v117
    %v179 = vpop.permute.xlu0 %178
    %181 = vset.pattern.permute.xlu0 2
    %182 = vperm.xlu0 %181, %v118
    %v183 = vpop.permute.xlu0 %182
    %185 = vset.pattern.permute.xlu0 2
    %186 = vperm.xlu0 %185, %v119
    %v187 = vpop.permute.xlu0 %186
    %189 = vset.pattern.permute.xlu0 2
    %190 = vperm.xlu0 %189, %v120
    %v191 = vpop.permute.xlu0 %190
    %v193 = vlaneseq
    %v194 = vshrl.u32 %v193, 7
    %v195 = vsub.s32 2, %v194
    %v196 = vrot.slane %v116, %v195
    %v197 = vmul.f32 %v179, %v196
    %v198 = vmul.f32 %v183, %v196
    %v199 = vmul.f32 %v187, %v196
    %v200 = vmul.f32 %v191, %v196
    %v201 = vadd.f32 %v173, %v197
    %v202 = vadd.f32 %v174, %v198
    %v203 = vadd.f32 %v175, %v199
    %v204 = vadd.f32 %v176, %v200
    %v205 = vld [vmem:[#allocation7] sm:$0xff]
    %v206 = vld [vmem:[#allocation7 + $0x8] sm:$0xff]
    %v207 = vld [vmem:[#allocation7 + $0x10] sm:$0xff]
    %v208 = vld [vmem:[#allocation7 + $0x18] sm:$0xff]
    %210 = vset.pattern.permute.xlu0 0
    %211 = vperm.xlu0 %210, %v205
    %v212 = vpop.permute.xlu0 %211
    %215 = vset.pattern.permute.xlu0 0
    %216 = vperm.xlu0 %215, %v206
    %v217 = vpop.permute.xlu0 %216
    %220 = vset.pattern.permute.xlu0 0
    %221 = vperm.xlu0 %220, %v207
    %v222 = vpop.permute.xlu0 %221
    %225 = vset.pattern.permute.xlu0 0
    %226 = vperm.xlu0 %225, %v208
    %v227 = vpop.permute.xlu0 %226
    %v229 = vadd.f32 %v201, %v212
    %v230 = vadd.f32 %v202, %v217
    %v231 = vadd.f32 %v203, %v222
    %v232 = vadd.f32 %v204, %v227
    %v233 = vtanh.pop %v229
    %v234 = vtanh.pop %v230
    %v235 = vtanh.pop %v231
    %v236 = vtanh.pop %v232
    %v237 = vld [vmem:[#allocation8] sm:$0xff]
    %v238 = vld [vmem:[#allocation8 + $0x8] sm:$0xff]
    %v239 = vld [vmem:[#allocation8 + $0x10] sm:$0xff]
    %v240 = vld [vmem:[#allocation8 + $0x18] sm:$0xff]
    %v241 = vld [vmem:[#allocation10] sm:$0xff]
    %v242 = vld [vmem:[#allocation10 + $0x8] sm:$0xff]
    %v243 = vld [vmem:[#allocation10 + $0x10] sm:$0xff]
    %v244 = vld [vmem:[#allocation10 + $0x18] sm:$0xff]
    %246 = vset.pattern.permute.xlu0 0
    %247 = vperm.xlu0 %246, %v241
    %v248 = vpop.permute.xlu0 %247
    %251 = vset.pattern.permute.xlu0 0
    %252 = vperm.xlu0 %251, %v242
    %v253 = vpop.permute.xlu0 %252
    %256 = vset.pattern.permute.xlu0 0
    %257 = vperm.xlu0 %256, %v243
    %v258 = vpop.permute.xlu0 %257
    %261 = vset.pattern.permute.xlu0 0
    %262 = vperm.xlu0 %261, %v244
    %v263 = vpop.permute.xlu0 %262
    %vm265 = vcmask 261120
    %v267 = vsel %vm265, %v237, 0
    %v270 = vsel %vm265, %v238, 0
    %v273 = vsel %vm265, %v239, 0
    %v276 = vsel %vm265, %v240, 0
    %278 = vmatprep.subr.mxu0 0.0
    %279 = vmatpush1.msra.mxu0 %v233
    %280 = vmatprep.subr.mxu0 0.0
    %281 = vmatpush1.msra.mxu0 %v234
    %282 = vmatprep.subr.mxu0 0.0
    %283 = vmatpush1.msra.mxu0 %v235
    %284 = vmatprep.subr.mxu0 0.0
    %285 = vmatpush1.msra.mxu0 %v236
    %286 = vmatprep.subr.mxu0 0.0
    %287 = vmatpush1.msra.mxu0 0.0
    %288 = vmatprep.subr.mxu0 0.0
    %289 = vmatpush1.msra.mxu0 0.0
    %290 = vmatprep.subr.mxu0 0.0
    %291 = vmatpush1.msra.mxu0 0.0
    %292 = vmatprep.subr.mxu0 0.0
    %293 = vmatpush1.msra.mxu0 0.0
    %294 = vmatprep.subr.mxu0 0.0
    %295 = vmatpush1.msra.mxu0 0.0
    %296 = vmatprep.subr.mxu0 0.0
    %297 = vmatpush1.msra.mxu0 0.0
    %298 = vmatprep.subr.mxu0 0.0
    %299 = vmatpush1.msra.mxu0 0.0
    %300 = vmatprep.subr.mxu0 0.0
    %301 = vmatpush1.msra.mxu0 0.0
    %302 = vmatprep.subr.mxu0 0.0
    %303 = vmatpush1.msra.mxu0 0.0
    %304 = vmatprep.subr.mxu0 0.0
    %305 = vmatpush1.msra.mxu0 0.0
    %306 = vmatprep.subr.mxu0 0.0
    %307 = vmatpush1.msra.mxu0 0.0
    %308 = vmatprep.subr.mxu0 0.0
    %309 = vmatpush1.msra.mxu0 0.0
    %310 = vmatprep.subr.mxu0 0.0
    %311 = vmatpush1.msra.mxu0 0.0
    %312 = vmatprep.subr.mxu0 0.0
    %313 = vmatpush1.msra.mxu0 0.0
    %314 = vmatprep.subr.mxu0 0.0
    %315 = vmatpush1.msra.mxu0 0.0
    %316 = vmatprep.subr.mxu0 0.0
    %317 = vmatpush1.msra.mxu0 0.0
    %318 = vmatprep.subr.mxu0 0.0
    %319 = vmatpush1.msra.mxu0 0.0
    %320 = vmatprep.subr.mxu0 0.0
    %321 = vmatpush1.msra.mxu0 0.0
    %322 = vmatprep.subr.mxu0 0.0
    %323 = vmatpush1.msra.mxu0 0.0
    %324 = vmatprep.subr.mxu0 0.0
    %325 = vmatpush1.msra.mxu0 0.0
    %326 = vmatprep.subr.mxu0 0.0
    %327 = vmatpush1.msra.mxu0 0.0
    %328 = vmatprep.subr.mxu0 0.0
    %329 = vmatpush1.msra.mxu0 0.0
    %330 = vmatprep.subr.mxu0 0.0
    %331 = vmatpush1.msra.mxu0 0.0
    %332 = vmatprep.subr.mxu0 0.0
    %333 = vmatpush1.msra.mxu0 0.0
    %334 = vmatprep.subr.mxu0 0.0
    %335 = vmatpush1.msra.mxu0 0.0
    %336 = vmatprep.subr.mxu0 0.0
    %337 = vmatpush1.msra.mxu0 0.0
    %338 = vmatprep.subr.mxu0 0.0
    %339 = vmatpush1.msra.mxu0 0.0
    %340 = vmatprep.subr.mxu0 0.0
    %341 = vmatpush1.msra.mxu0 0.0
    %342 = vmatprep.mubr.f32.mxu0 0.0
    %343 = vmatmul.mubr.f32.gmra.mrb[0].mxu0 %v267
    %v344 = vpop.f32.mrb[0].mxu0
    %v345 = vadd.f32 %v248, %v344
    %v346 = vpop.f32.mrb[0].mxu0
    %347 = vmatprep.mubr.f32.mxu0 0.0
    %348 = vmatmul.mubr.f32.gmra.mrb[0].mxu0 %v270
    %v349 = vpop.f32.mrb[0].mxu0
    %v350 = vadd.f32 %v253, %v349
    %v351 = vpop.f32.mrb[0].mxu0
    %352 = vmatprep.mubr.f32.mxu0 0.0
    %353 = vmatmul.mubr.f32.gmra.mrb[0].mxu0 %v273
    %v354 = vpop.f32.mrb[0].mxu0
    %v355 = vadd.f32 %v258, %v354
    %v356 = vpop.f32.mrb[0].mxu0
    %357 = vmatprep.mubr.f32.mxu0 0.0
    %358 = vmatmul.mubr.f32.gmra.mrb[0].mxu0 %v276
    %v359 = vpop.f32.mrb[0].mxu0
    %v360 = vadd.f32 %v263, %v359
    %v361 = vpop.f32.mrb[0].mxu0
    %362 = vdwg.mxu0
    %v363 = vtanh.pop %v345
    %v364 = vtanh.pop %v350
    %v365 = vtanh.pop %v355
    %v366 = vtanh.pop %v360
    %v367 = vld [vmem:[#allocation11] sm:$0x3]
    %v368 = vld [vmem:[#allocation13] sm:$0x3]
    %370 = vset.pattern.permute.xlu0 0
    %371 = vperm.xlu0 %370, %v368
    %v372 = vpop.permute.xlu0 %371
    %v375 = vsel %vm265, %v367, 0
    %377 = vmatprep.subr.mxu0 0.0
    %378 = vmatpush1.msra.mxu0 %v363
    %379 = vmatprep.subr.mxu0 0.0
    %380 = vmatpush1.msra.mxu0 %v364
    %381 = vmatprep.subr.mxu0 0.0
    %382 = vmatpush1.msra.mxu0 %v365
    %383 = vmatprep.subr.mxu0 0.0
    %384 = vmatpush1.msra.mxu0 %v366
    %385 = vmatprep.subr.mxu0 0.0
    %386 = vmatpush1.msra.mxu0 0.0
    %387 = vmatprep.subr.mxu0 0.0
    %388 = vmatpush1.msra.mxu0 0.0
    %389 = vmatprep.subr.mxu0 0.0
    %390 = vmatpush1.msra.mxu0 0.0
    %391 = vmatprep.subr.mxu0 0.0
    %392 = vmatpush1.msra.mxu0 0.0
    %393 = vmatprep.subr.mxu0 0.0
    %394 = vmatpush1.msra.mxu0 0.0
    %395 = vmatprep.subr.mxu0 0.0
    %396 = vmatpush1.msra.mxu0 0.0
    %397 = vmatprep.subr.mxu0 0.0
    %398 = vmatpush1.msra.mxu0 0.0
    %399 = vmatprep.subr.mxu0 0.0
    %400 = vmatpush1.msra.mxu0 0.0
    %401 = vmatprep.subr.mxu0 0.0
    %402 = vmatpush1.msra.mxu0 0.0
    %403 = vmatprep.subr.mxu0 0.0
    %404 = vmatpush1.msra.mxu0 0.0
    %405 = vmatprep.subr.mxu0 0.0
    %406 = vmatpush1.msra.mxu0 0.0
    %407 = vmatprep.subr.mxu0 0.0
    %408 = vmatpush1.msra.mxu0 0.0
    %409 = vmatprep.subr.mxu0 0.0
    %410 = vmatpush1.msra.mxu0 0.0
    %411 = vmatprep.subr.mxu0 0.0
    %412 = vmatpush1.msra.mxu0 0.0
    %413 = vmatprep.subr.mxu0 0.0
    %414 = vmatpush1.msra.mxu0 0.0
    %415 = vmatprep.subr.mxu0 0.0
    %416 = vmatpush1.msra.mxu0 0.0
    %417 = vmatprep.subr.mxu0 0.0
    %418 = vmatpush1.msra.mxu0 0.0
    %419 = vmatprep.subr.mxu0 0.0
    %420 = vmatpush1.msra.mxu0 0.0
    %421 = vmatprep.subr.mxu0 0.0
    %422 = vmatpush1.msra.mxu0 0.0
    %423 = vmatprep.subr.mxu0 0.0
    %424 = vmatpush1.msra.mxu0 0.0
    %425 = vmatprep.subr.mxu0 0.0
    %426 = vmatpush1.msra.mxu0 0.0
    %427 = vmatprep.subr.mxu0 0.0
    %428 = vmatpush1.msra.mxu0 0.0
    %429 = vmatprep.subr.mxu0 0.0
    %430 = vmatpush1.msra.mxu0 0.0
    %431 = vmatprep.subr.mxu0 0.0
    %432 = vmatpush1.msra.mxu0 0.0
    %433 = vmatprep.subr.mxu0 0.0
    %434 = vmatpush1.msra.mxu0 0.0
    %435 = vmatprep.subr.mxu0 0.0
    %436 = vmatpush1.msra.mxu0 0.0
    %437 = vmatprep.subr.mxu0 0.0
    %438 = vmatpush1.msra.mxu0 0.0
    %439 = vmatprep.subr.mxu0 0.0
    %440 = vmatpush1.msra.mxu0 0.0
    %441 = vmatprep.mubr.f32.mxu0 0.0
    %442 = vmatmul.mubr.f32.gmra.mrb[0].mxu0 %v375
    %v443 = vpop.f32.mrb[0].mxu0
    %v444 = vadd.f32 %v372, %v443
    %v445 = vpop.f32.mrb[0].mxu0
    %446 = vdwg.mxu0
    %447 = vst [vmem:[#allocation14] sm:$0x1] %v444
    %v448 = vmax.f32 %v444, -20.0
    %v449 = vmin.f32 %v448, 2.0
    %v450 = vmul.f32 %v449, 1.442695
    %v451 = vpow.pop %v450
    %452 = vst [vmem:[#allocation14] sm:$0x2] %v451
    // Predicated region
    $region58: #{tpu_custom_call.1} parent=1 // pred_check
      _
    $region59: #{tpu_custom_call.1} parent=1 // pred_check_branch
      %454 = sbr.rel (0) target = $region61
    $region60: #{tpu_custom_call.1} parent=1 // pred_region
      %s456 = ssub.s32 32, 32
      %457 = vsyncadd [#allocation4], %s456
      %s459 = sshll.u32 [#allocation14], 4
      %s460 = int_to_ptr.vmem [resolvable:$true] %s459
      %462 = dma.vmem_to_hbm [thread:$0]  %s460, 32, %s7, [#allocation4]
    $region61: #{tpu_custom_call.1} parent=1 // pred_fallthru
      _
    // Predicated region
    $region62: #{tpu_custom_call.1} parent=1 // pred_check
      _
    $region63: #{tpu_custom_call.1} parent=1 // pred_check_branch
      %464 = sbr.rel (0) target = $region65
    $region64: #{tpu_custom_call.1} parent=1 // pred_region
      %465 = dma.done [#allocation4], 32
    $region65: #{tpu_custom_call.1} parent=1 // pred_fallthru
      _
    %466 = vsyncpa [#allocation3], 1
    %467 = vsyncpa [#allocation6], 1
    %468 = vsyncpa [#allocation9], 1
    %469 = vsyncpa [#allocation12], 1
    %470 = vsyncpa [#allocation4], 1

</llo_original>
